<compile_context>
chip_gen: v6e
topology: v6e:2x2x1
jax: 0.10.0
libtpu: 0.0.40
codegen_flags: <defaults>
</compile_context>

<pallas_src>
import functools
import math

import numpy as np
import jax
import jax.numpy as jnp
from jax import lax
from jax.experimental import pallas as pl
from jax.experimental.pallas import tpu as pltpu  # noqa: F401  (TPU backend)

LN_EPS = 1e-5  # nn.LayerNorm default


# --------------------------------- kernel -----------------------------------
def _cross_attention_block_kernel(
    qkv_ref, wattn_ref, wffn_ref, const_ref, o_ref,
    *, B, Sq, Skv, H, Dh, N):
    """Entire CrossAttentionBlock forward; all activations stay in VMEM/vregs."""
    E = H * Dh
    nq = B * Sq
    nkv = B * Skv

    # ---- unpack the constant slab ([8 + nq + H*nkv, 128]) ------------------
    consts = const_ref[...]
    bq = consts[0:1, 0:E]                       # pre-scaled by 1/sqrt(Dh)
    bk = consts[1:2, 0:E]
    bv = consts[2:3, 0:E]
    bo = consts[3:4, 0:E]
    b1 = consts[4:5, 0:N]
    b2 = consts[5:6, 0:E]
    gamma = consts[6:7, 0:E]
    beta = consts[7:8, 0:E]
    bias_all = consts[8:8 + nq, 0:H * nkv]              # [nq, H*nkv]
    head_mask = consts[8 + nq:8 + nq + H * nkv, 0:E]    # [H*nkv, E]

    # hoist gamma/beta broadcasts once (shared by the 3 LayerNorm calls;
    # JAX does not CSE broadcast_in_dim).
    gamma_b = jnp.broadcast_to(gamma, (nq, E))
    beta_b = jnp.broadcast_to(beta, (nq, E))

    def layer_norm(h):
        # one-pass mean / mean-of-squares: the two XLU reductions can overlap
        mu = jnp.mean(h, axis=-1, keepdims=True)
        msq = jnp.mean(h * h, axis=-1, keepdims=True)
        var = msq - mu * mu
        return (h - mu) * lax.rsqrt(var + LN_EPS) * gamma_b + beta_b

    # ---- unpack the weight slabs --------------------------------------------
    wattn = wattn_ref[...]                              # [E, 4E] = [32, 128]
    wq = wattn[:, 0:E]                                  # pre-scaled by 1/sqrt(Dh)
    wk = wattn[:, E:2 * E]
    wv = wattn[:, 2 * E:3 * E]
    wo = wattn[:, 3 * E:4 * E]
    wffn = wffn_ref[...]                                # [E+N, N]
    w1 = wffn[0:E, :]                                   # [E, N]
    w2 = wffn[E:E + N, 0:E]                             # [N, E]

    q_in = qkv_ref[0:nq, :]                             # [nq,  E]
    k_in = qkv_ref[nq:nq + nkv, :]                      # [nkv, E]
    v_in = qkv_ref[nq + nkv:nq + 2 * nkv, :]            # [nkv, E]

    # ---- x = norm(q), in-projections (MXU, f32 accumulation) ---------------
    x = layer_norm(q_in)
    q_p = jnp.dot(x, wq, preferred_element_type=jnp.float32) + bq     # [nq,  E]
    k_p = jnp.dot(k_in, wk, preferred_element_type=jnp.float32) + bk  # [nkv, E]
    v_p = jnp.dot(v_in, wv, preferred_element_type=jnp.float32) + bv  # [nkv, E]

    # ---- packed multi-head attention: 2 matmuls, 1 exp ---------------------
    # Heads are packed along rows of K/V; head_mask zeroes the feature columns
    # that do not belong to each row-block's head, so a single contraction over
    # E yields every per-head score, and a single P @ [V_pack | head_mask]
    # matmul yields the merged-head context (disjoint head columns) plus the
    # per-head softmax denominators broadcast onto those same columns.
    k_pack = jnp.concatenate([k_p] * H, axis=0) * head_mask            # [H*nkv, E]
    v_pack = jnp.concatenate([v_p] * H, axis=0) * head_mask            # [H*nkv, E]

    s_all = lax.dot_general(
        q_p, k_pack,
        dimension_numbers=(((1,), (1,)), ((), ())),
        preferred_element_type=jnp.float32) + bias_all                 # [nq, H*nkv]
    # A per-row global max is constant within each head segment, so the
    # per-head softmax is unchanged; scores are O(1) here -> no underflow risk.
    m = jnp.max(s_all, axis=-1, keepdims=True)
    p = jnp.exp(s_all - m)                                             # [nq, H*nkv]

    vo = jnp.concatenate([v_pack, head_mask], axis=1)                  # [H*nkv, 2E]
    cd = jnp.dot(p, vo, preferred_element_type=jnp.float32)            # [nq, 2E]
    ctx = cd[:, 0:E] * pl.reciprocal(cd[:, E:2 * E], approx=True)      # [nq, E]

    # ---- out-projection, residuals, FFN, shared LayerNorms -----------------
    f_a = jnp.dot(ctx, wo, preferred_element_type=jnp.float32) + bo
    q_fa = q_in + f_a                            # residual (q + f_a), reused twice
    f_b = layer_norm(q_fa)

    h1 = jnp.dot(f_b, w1, preferred_element_type=jnp.float32) + b1
    h2 = jnp.dot(h1, w2, preferred_element_type=jnp.float32) + b2
    fc_1 = jnp.maximum(h2, 0.0)                  # relu(linear2(linear1(f_b)))

    o_ref[...] = layer_norm(fc_1 + q_fa)


# ------------------------------ host-side packing ----------------------------
def _pack_inputs(q, k, v, params, *, n_head):
    """Pack the 17 former inputs into 4 lane-dense slabs (done once per call;
    in production the weight/const slabs would be packed ahead of time)."""
    B, Sq, E = q.shape
    Skv = k.shape[1]
    H = n_head
    Dh = E // H
    N = params["w1"].shape[1]
    nq, nkv = B * Sq, B * Skv
    f32 = jnp.float32
    lanes = 128

    # slab 0: activations  [nq + 2*nkv, E]
    qkv = jnp.concatenate(
        [q.reshape(nq, E), k.reshape(nkv, E), v.reshape(nkv, E)], axis=0)

    # slab 1: attention weights  [E, 4E]  (score scale folded into wq)
    scale = 1.0 / math.sqrt(Dh)
    w_attn = jnp.concatenate(
        [params["wq"] * scale, params["wk"], params["wv"], params["wo"]],
        axis=1).astype(f32)

    # slab 2: FFN weights  [E+N, N]  (w2 occupies rows E:E+N, cols 0:E)
    w_ffn = jnp.zeros((E + N, N), f32)
    w_ffn = w_ffn.at[0:E, 0:N].set(params["w1"])
    w_ffn = w_ffn.at[E:E + N, 0:E].set(params["w2"])

    # slab 3: constants  [8 + nq + H*nkv, 128]
    def pad_row(vec):
        return jnp.zeros((1, lanes), f32).at[0, :vec.shape[0]].set(vec)

    bias_rows = jnp.concatenate([
        pad_row(params["bq"] * scale), pad_row(params["bk"]),
        pad_row(params["bv"]), pad_row(params["bo"]),
        pad_row(params["b1"]), pad_row(params["b2"]),
        pad_row(params["ln_g"]), pad_row(params["ln_b"])], axis=0)     # [8, 128]

    # block-diagonal batch bias (finite -1e9, NaN-proof), tiled over heads.
    row_b = np.arange(nq)[:, None] // Sq
    col_b = np.arange(nkv)[None, :] // Skv
    batch_bias = np.where(row_b == col_b, 0.0, -1e9).astype(np.float32)
    bias_all = np.zeros((nq, lanes), np.float32)
    bias_all[:, :H * nkv] = np.tile(batch_bias, (1, H))

    # head mask: packed-K/V row r belongs to head r // nkv and keeps only that
    # head's Dh feature columns.
    head_of_row = np.arange(H * nkv)[:, None] // nkv
    head_of_col = np.arange(E)[None, :] // Dh
    head_mask = np.zeros((H * nkv, lanes), np.float32)
    head_mask[:, :E] = (head_of_row == head_of_col).astype(np.float32)

    const = jnp.concatenate(
        [bias_rows, jnp.asarray(bias_all), jnp.asarray(head_mask)], axis=0)

    dims = dict(B=B, Sq=Sq, Skv=Skv, H=H, Dh=Dh, N=N)
    return qkv, w_attn, w_ffn, const, dims


# --------------------------------- wrapper ----------------------------------
def cross_attention_block(q, k, v, params, *, n_head):
    B, Sq, E = q.shape
    qkv, w_attn, w_ffn, const, dims = _pack_inputs(q, k, v, params, n_head=n_head)

    def full(shape):  # whole-array block, no grid (everything fits VMEM easily)
        zeros = (0,) * len(shape)
        return pl.BlockSpec(shape, lambda: zeros)

    kernel = functools.partial(_cross_attention_block_kernel, **dims)

    out2 = pl.pallas_call(
        kernel,
        out_shape=jax.ShapeDtypeStruct((B * Sq, E), jnp.float32),
        in_specs=[full(qkv.shape), full(w_attn.shape),
                  full(w_ffn.shape), full(const.shape)],
        out_specs=full((B * Sq, E)),
    )(qkv, w_attn, w_ffn, const)
    return out2.reshape(B, Sq, E)


# --------------------------- pure-JAX reference ------------------------------
def reference(q, k, v, params, *, n_head):
    B, Sq, E = q.shape
    Skv = k.shape[1]
    Dh = E // n_head
    hp = lax.Precision.HIGHEST

    def ln(h):
        mu = h.mean(-1, keepdims=True)
        var = ((h - mu) ** 2).mean(-1, keepdims=True)
        return (h - mu) / jnp.sqrt(var + LN_EPS) * params["ln_g"] + params["ln_b"]

    x = ln(q)
    qp = jnp.einsum("bse,ef->bsf", x, params["wq"], precision=hp) + params["bq"]
    kp = jnp.einsum("bse,ef->bsf", k, params["wk"], precision=hp) + params["bk"]
    vp = jnp.einsum("bse,ef->bsf", v, params["wv"], precision=hp) + params["bv"]
    qh = qp.reshape(B, Sq, n_head, Dh).transpose(0, 2, 1, 3)
    kh = kp.reshape(B, Skv, n_head, Dh).transpose(0, 2, 1, 3)
    vh = vp.reshape(B, Skv, n_head, Dh).transpose(0, 2, 1, 3)
    s = jnp.einsum("bhqd,bhkd->bhqk", qh, kh, precision=hp) / math.sqrt(Dh)
    p = jax.nn.softmax(s, axis=-1)
    ctx = jnp.einsum("bhqk,bhkd->bhqd", p, vh, precision=hp)
    ctx = ctx.transpose(0, 2, 1, 3).reshape(B, Sq, E)
    f_a = jnp.einsum("bse,ef->bsf", ctx, params["wo"], precision=hp) + params["bo"]
    q_plus_fa = q + f_a
    f_b = ln(q_plus_fa)
    h1 = jnp.einsum("bse,ef->bsf", f_b, params["w1"], precision=hp) + params["b1"]
    h2 = jnp.einsum("bse,ef->bsf", h1, params["w2"], precision=hp) + params["b2"]
    fc_1 = jnp.maximum(h2, 0.0)
    return ln(fc_1 + q_plus_fa)


# ------------------------------------ main -----------------------------------
if __name__ == "__main__":
    E, H, N_HIDDEN = 32, 4, 64          # embed_dim, n_head, n_hidden
    B, SQ, SKV = 2, 8, 8                # batch, query seq, key/value seq

    key = jax.random.PRNGKey(0)
    ks = jax.random.split(key, 16)

    def w(k_, shape, std=0.05):
        return std * jax.random.normal(k_, shape, dtype=jnp.float32)

    params = dict(
        wq=w(ks[0], (E, E)), bq=w(ks[1], (E,)),
        wk=w(ks[2], (E, E)), bk=w(ks[3], (E,)),
        wv=w(ks[4], (E, E)), bv=w(ks[5], (E,)),
        wo=w(ks[6], (E, E)), bo=w(ks[7], (E,)),
        w1=w(ks[8], (E, N_HIDDEN)), b1=w(ks[9], (N_HIDDEN,)),
        w2=w(ks[10], (N_HIDDEN, E)), b2=w(ks[11], (E,)),
        ln_g=jnp.ones((E,), jnp.float32),
        ln_b=jnp.zeros((E,), jnp.float32),
    )

    q = jax.random.normal(ks[12], (B, SQ, E), dtype=jnp.float32)
    k = jax.random.normal(ks[13], (B, SKV, E), dtype=jnp.float32)
    v = jax.random.normal(ks[14], (B, SKV, E), dtype=jnp.float32)

    fwd = jax.jit(functools.partial(cross_attention_block, n_head=H))
    out = jax.block_until_ready(fwd(q, k, v, params))

    ref = reference(q, k, v, params, n_head=H)
    assert out.shape == (B, SQ, E) and out.dtype == jnp.float32
    assert jnp.allclose(out, ref, atol=2e-2, rtol=2e-2), float(
        jnp.max(jnp.abs(out - ref)))
    print("KERNEL_OK")
</pallas_src>

<mosaic_0001>
module attributes {stable_mosaic.version = 11 : i64} {
  func.func @_cross_attention_block_kernel(%arg0: memref<48x32xf32, #tpu.memory_space<vmem>>, %arg1: memref<32x128xf32, #tpu.memory_space<vmem>>, %arg2: memref<96x64xf32, #tpu.memory_space<vmem>>, %arg3: memref<88x128xf32, #tpu.memory_space<vmem>>, %arg4: memref<16x32xf32, #tpu.memory_space<vmem>>) attributes {dimension_semantics = [], scalar_prefetch = 0 : i64, scratch_operands = 0 : i64, tpu.core_type = #tpu.core_type<tc>} {
    %c0 = arith.constant 0 : index
    %c0_0 = arith.constant 0 : index
    %0 = vector.load %arg3[%c0, %c0_0] : memref<88x128xf32, #tpu.memory_space<vmem>>, vector<88x128xf32>
    %1 = vector.extract_strided_slice %0 {offsets = [0, 0], sizes = [1, 32], strides = [1, 1]} : vector<88x128xf32> to vector<1x32xf32>
    %2 = vector.extract_strided_slice %0 {offsets = [1, 0], sizes = [1, 32], strides = [1, 1]} : vector<88x128xf32> to vector<1x32xf32>
    %3 = vector.extract_strided_slice %0 {offsets = [2, 0], sizes = [1, 32], strides = [1, 1]} : vector<88x128xf32> to vector<1x32xf32>
    %4 = vector.extract_strided_slice %0 {offsets = [3, 0], sizes = [1, 32], strides = [1, 1]} : vector<88x128xf32> to vector<1x32xf32>
    %5 = vector.extract_strided_slice %0 {offsets = [4, 0], sizes = [1, 64], strides = [1, 1]} : vector<88x128xf32> to vector<1x64xf32>
    %6 = vector.extract_strided_slice %0 {offsets = [5, 0], sizes = [1, 32], strides = [1, 1]} : vector<88x128xf32> to vector<1x32xf32>
    %7 = vector.extract_strided_slice %0 {offsets = [6, 0], sizes = [1, 32], strides = [1, 1]} : vector<88x128xf32> to vector<1x32xf32>
    %8 = vector.extract_strided_slice %0 {offsets = [7, 0], sizes = [1, 32], strides = [1, 1]} : vector<88x128xf32> to vector<1x32xf32>
    %9 = vector.extract_strided_slice %0 {offsets = [8, 0], sizes = [16, 64], strides = [1, 1]} : vector<88x128xf32> to vector<16x64xf32>
    %10 = vector.extract_strided_slice %0 {offsets = [24, 0], sizes = [64, 32], strides = [1, 1]} : vector<88x128xf32> to vector<64x32xf32>
    %11 = vector.shape_cast %7 : vector<1x32xf32> to vector<1x32xf32>
    %12 = vector.broadcast %11 : vector<1x32xf32> to vector<16x32xf32>
    %13 = vector.shape_cast %8 : vector<1x32xf32> to vector<1x32xf32>
    %14 = vector.broadcast %13 : vector<1x32xf32> to vector<16x32xf32>
    %c0_1 = arith.constant 0 : index
    %c0_2 = arith.constant 0 : index
    %15 = vector.load %arg1[%c0_1, %c0_2] : memref<32x128xf32, #tpu.memory_space<vmem>>, vector<32x128xf32>
    %16 = vector.extract_strided_slice %15 {offsets = [0, 0], sizes = [32, 32], strides = [1, 1]} : vector<32x128xf32> to vector<32x32xf32>
    %17 = vector.extract_strided_slice %15 {offsets = [0, 32], sizes = [32, 32], strides = [1, 1]} : vector<32x128xf32> to vector<32x32xf32>
    %18 = vector.extract_strided_slice %15 {offsets = [0, 64], sizes = [32, 32], strides = [1, 1]} : vector<32x128xf32> to vector<32x32xf32>
    %19 = vector.extract_strided_slice %15 {offsets = [0, 96], sizes = [32, 32], strides = [1, 1]} : vector<32x128xf32> to vector<32x32xf32>
    %c0_3 = arith.constant 0 : index
    %c0_4 = arith.constant 0 : index
    %20 = vector.load %arg2[%c0_3, %c0_4] : memref<96x64xf32, #tpu.memory_space<vmem>>, vector<96x64xf32>
    %21 = vector.extract_strided_slice %20 {offsets = [0, 0], sizes = [32, 64], strides = [1, 1]} : vector<96x64xf32> to vector<32x64xf32>
    %22 = vector.extract_strided_slice %20 {offsets = [32, 0], sizes = [64, 32], strides = [1, 1]} : vector<96x64xf32> to vector<64x32xf32>
    %c0_5 = arith.constant 0 : index
    %c0_6 = arith.constant 0 : index
    %23 = vector.load %arg0[%c0_5, %c0_6] : memref<48x32xf32, #tpu.memory_space<vmem>>, vector<16x32xf32>
    %c16 = arith.constant 16 : index
    %c0_7 = arith.constant 0 : index
    %24 = vector.load %arg0[%c16, %c0_7] : memref<48x32xf32, #tpu.memory_space<vmem>>, vector<16x32xf32>
    %c32 = arith.constant 32 : index
    %c0_8 = arith.constant 0 : index
    %25 = vector.load %arg0[%c32, %c0_8] : memref<48x32xf32, #tpu.memory_space<vmem>>, vector<16x32xf32>
    %cst = arith.constant dense<0.000000e+00> : vector<16xf32>
    %26 = vector.multi_reduction <add>, %23, %cst [1] : vector<16x32xf32> to vector<16xf32>
    %27 = vector.shape_cast %26 : vector<16xf32> to vector<16x1xf32>
    %cst_9 = arith.constant 3.200000e+01 : f32
    %28 = vector.broadcast %cst_9 : f32 to vector<16x1xf32>
    %29 = arith.divf %27, %28 : vector<16x1xf32>
    %30 = arith.mulf %23, %23 : vector<16x32xf32>
    %cst_10 = arith.constant dense<0.000000e+00> : vector<16xf32>
    %31 = vector.multi_reduction <add>, %30, %cst_10 [1] : vector<16x32xf32> to vector<16xf32>
    %32 = vector.shape_cast %31 : vector<16xf32> to vector<16x1xf32>
    %cst_11 = arith.constant 3.200000e+01 : f32
    %33 = vector.broadcast %cst_11 : f32 to vector<16x1xf32>
    %34 = arith.divf %32, %33 : vector<16x1xf32>
    %35 = arith.mulf %29, %29 : vector<16x1xf32>
    %36 = arith.subf %34, %35 : vector<16x1xf32>
    %37 = vector.broadcast %29 : vector<16x1xf32> to vector<16x32xf32>
    %38 = arith.subf %23, %37 : vector<16x32xf32>
    %cst_12 = arith.constant 9.99999974E-6 : f32
    %39 = vector.broadcast %cst_12 : f32 to vector<16x1xf32>
    %40 = arith.addf %36, %39 : vector<16x1xf32>
    %41 = math.rsqrt %40 : vector<16x1xf32>
    %42 = vector.broadcast %41 : vector<16x1xf32> to vector<16x32xf32>
    %43 = arith.mulf %38, %42 : vector<16x32xf32>
    %44 = arith.mulf %43, %12 : vector<16x32xf32>
    %45 = arith.addf %44, %14 : vector<16x32xf32>
    %cst_13 = arith.constant dense<0.000000e+00> : vector<16x32xf32>
    %46 = tpu.matmul %45, %16, %cst_13 {dimension_numbers = #tpu.dot_dimension_numbers<[1], [0], [0], [1], [0, 0, 1, 1], [], []>} : vector<16x32xf32>, vector<32x32xf32>, vector<16x32xf32> -> vector<16x32xf32>
    %47 = vector.broadcast %1 : vector<1x32xf32> to vector<16x32xf32>
    %48 = arith.addf %46, %47 : vector<16x32xf32>
    %cst_14 = arith.constant dense<0.000000e+00> : vector<16x32xf32>
    %49 = tpu.matmul %24, %17, %cst_14 {dimension_numbers = #tpu.dot_dimension_numbers<[1], [0], [0], [1], [0, 0, 1, 1], [], []>} : vector<16x32xf32>, vector<32x32xf32>, vector<16x32xf32> -> vector<16x32xf32>
    %50 = vector.broadcast %2 : vector<1x32xf32> to vector<16x32xf32>
    %51 = arith.addf %49, %50 : vector<16x32xf32>
    %cst_15 = arith.constant dense<0.000000e+00> : vector<16x32xf32>
    %52 = tpu.matmul %25, %18, %cst_15 {dimension_numbers = #tpu.dot_dimension_numbers<[1], [0], [0], [1], [0, 0, 1, 1], [], []>} : vector<16x32xf32>, vector<32x32xf32>, vector<16x32xf32> -> vector<16x32xf32>
    %53 = vector.broadcast %3 : vector<1x32xf32> to vector<16x32xf32>
    %54 = arith.addf %52, %53 : vector<16x32xf32>
    %55 = tpu.concatenate %51, %51, %51, %51 in 0 : vector<16x32xf32>, vector<16x32xf32>, vector<16x32xf32>, vector<16x32xf32> -> vector<64x32xf32>
    %56 = arith.mulf %55, %10 : vector<64x32xf32>
    %57 = tpu.concatenate %54, %54, %54, %54 in 0 : vector<16x32xf32>, vector<16x32xf32>, vector<16x32xf32>, vector<16x32xf32> -> vector<64x32xf32>
    %58 = arith.mulf %57, %10 : vector<64x32xf32>
    %cst_16 = arith.constant dense<0.000000e+00> : vector<16x64xf32>
    %59 = tpu.matmul %48, %56, %cst_16 {dimension_numbers = #tpu.dot_dimension_numbers<[1], [1], [0], [0], [0, 0, 1, 0], [], []>} : vector<16x32xf32>, vector<64x32xf32>, vector<16x64xf32> -> vector<16x64xf32>
    %60 = arith.addf %59, %9 : vector<16x64xf32>
    %cst_17 = arith.constant dense<0xFF800000> : vector<16xf32>
    %61 = vector.multi_reduction <maximumf>, %60, %cst_17 [1] : vector<16x64xf32> to vector<16xf32>
    %62 = vector.shape_cast %61 : vector<16xf32> to vector<16x1xf32>
    %63 = vector.broadcast %62 : vector<16x1xf32> to vector<16x64xf32>
    %64 = arith.subf %60, %63 : vector<16x64xf32>
    %65 = math.exp %64 : vector<16x64xf32>
    %66 = tpu.concatenate %58, %10 in 1 : vector<64x32xf32>, vector<64x32xf32> -> vector<64x64xf32>
    %cst_18 = arith.constant dense<0.000000e+00> : vector<16x64xf32>
    %67 = tpu.matmul %65, %66, %cst_18 {dimension_numbers = #tpu.dot_dimension_numbers<[1], [0], [0], [1], [0, 0, 1, 1], [], []>} : vector<16x64xf32>, vector<64x64xf32>, vector<16x64xf32> -> vector<16x64xf32>
    %68 = vector.extract_strided_slice %67 {offsets = [0, 0], sizes = [16, 32], strides = [1, 1]} : vector<16x64xf32> to vector<16x32xf32>
    %69 = vector.extract_strided_slice %67 {offsets = [0, 32], sizes = [16, 32], strides = [1, 1]} : vector<16x64xf32> to vector<16x32xf32>
    %70 = tpu.reciprocal %69 {approx = true} : vector<16x32xf32> -> vector<16x32xf32>
    %71 = arith.mulf %68, %70 : vector<16x32xf32>
    %cst_19 = arith.constant dense<0.000000e+00> : vector<16x32xf32>
    %72 = tpu.matmul %71, %19, %cst_19 {dimension_numbers = #tpu.dot_dimension_numbers<[1], [0], [0], [1], [0, 0, 1, 1], [], []>} : vector<16x32xf32>, vector<32x32xf32>, vector<16x32xf32> -> vector<16x32xf32>
    %73 = vector.broadcast %4 : vector<1x32xf32> to vector<16x32xf32>
    %74 = arith.addf %72, %73 : vector<16x32xf32>
    %75 = arith.addf %23, %74 : vector<16x32xf32>
    %cst_20 = arith.constant dense<0.000000e+00> : vector<16xf32>
    %76 = vector.multi_reduction <add>, %75, %cst_20 [1] : vector<16x32xf32> to vector<16xf32>
    %77 = vector.shape_cast %76 : vector<16xf32> to vector<16x1xf32>
    %cst_21 = arith.constant 3.200000e+01 : f32
    %78 = vector.broadcast %cst_21 : f32 to vector<16x1xf32>
    %79 = arith.divf %77, %78 : vector<16x1xf32>
    %80 = arith.mulf %75, %75 : vector<16x32xf32>
    %cst_22 = arith.constant dense<0.000000e+00> : vector<16xf32>
    %81 = vector.multi_reduction <add>, %80, %cst_22 [1] : vector<16x32xf32> to vector<16xf32>
    %82 = vector.shape_cast %81 : vector<16xf32> to vector<16x1xf32>
    %cst_23 = arith.constant 3.200000e+01 : f32
    %83 = vector.broadcast %cst_23 : f32 to vector<16x1xf32>
    %84 = arith.divf %82, %83 : vector<16x1xf32>
    %85 = arith.mulf %79, %79 : vector<16x1xf32>
    %86 = arith.subf %84, %85 : vector<16x1xf32>
    %87 = vector.broadcast %79 : vector<16x1xf32> to vector<16x32xf32>
    %88 = arith.subf %75, %87 : vector<16x32xf32>
    %cst_24 = arith.constant 9.99999974E-6 : f32
    %89 = vector.broadcast %cst_24 : f32 to vector<16x1xf32>
    %90 = arith.addf %86, %89 : vector<16x1xf32>
    %91 = math.rsqrt %90 : vector<16x1xf32>
    %92 = vector.broadcast %91 : vector<16x1xf32> to vector<16x32xf32>
    %93 = arith.mulf %88, %92 : vector<16x32xf32>
    %94 = arith.mulf %93, %12 : vector<16x32xf32>
    %95 = arith.addf %94, %14 : vector<16x32xf32>
    %cst_25 = arith.constant dense<0.000000e+00> : vector<16x64xf32>
    %96 = tpu.matmul %95, %21, %cst_25 {dimension_numbers = #tpu.dot_dimension_numbers<[1], [0], [0], [1], [0, 0, 1, 1], [], []>} : vector<16x32xf32>, vector<32x64xf32>, vector<16x64xf32> -> vector<16x64xf32>
    %97 = vector.broadcast %5 : vector<1x64xf32> to vector<16x64xf32>
    %98 = arith.addf %96, %97 : vector<16x64xf32>
    %cst_26 = arith.constant dense<0.000000e+00> : vector<16x32xf32>
    %99 = tpu.matmul %98, %22, %cst_26 {dimension_numbers = #tpu.dot_dimension_numbers<[1], [0], [0], [1], [0, 0, 1, 1], [], []>} : vector<16x64xf32>, vector<64x32xf32>, vector<16x32xf32> -> vector<16x32xf32>
    %100 = vector.broadcast %6 : vector<1x32xf32> to vector<16x32xf32>
    %101 = arith.addf %99, %100 : vector<16x32xf32>
    %cst_27 = arith.constant 0.000000e+00 : f32
    %102 = vector.broadcast %cst_27 : f32 to vector<16x32xf32>
    %103 = arith.maximumf %101, %102 : vector<16x32xf32>
    %104 = arith.addf %103, %75 : vector<16x32xf32>
    %cst_28 = arith.constant dense<0.000000e+00> : vector<16xf32>
    %105 = vector.multi_reduction <add>, %104, %cst_28 [1] : vector<16x32xf32> to vector<16xf32>
    %106 = vector.shape_cast %105 : vector<16xf32> to vector<16x1xf32>
    %cst_29 = arith.constant 3.200000e+01 : f32
    %107 = vector.broadcast %cst_29 : f32 to vector<16x1xf32>
    %108 = arith.divf %106, %107 : vector<16x1xf32>
    %109 = arith.mulf %104, %104 : vector<16x32xf32>
    %cst_30 = arith.constant dense<0.000000e+00> : vector<16xf32>
    %110 = vector.multi_reduction <add>, %109, %cst_30 [1] : vector<16x32xf32> to vector<16xf32>
    %111 = vector.shape_cast %110 : vector<16xf32> to vector<16x1xf32>
    %cst_31 = arith.constant 3.200000e+01 : f32
    %112 = vector.broadcast %cst_31 : f32 to vector<16x1xf32>
    %113 = arith.divf %111, %112 : vector<16x1xf32>
    %114 = arith.mulf %108, %108 : vector<16x1xf32>
    %115 = arith.subf %113, %114 : vector<16x1xf32>
    %116 = vector.broadcast %108 : vector<16x1xf32> to vector<16x32xf32>
    %117 = arith.subf %104, %116 : vector<16x32xf32>
    %cst_32 = arith.constant 9.99999974E-6 : f32
    %118 = vector.broadcast %cst_32 : f32 to vector<16x1xf32>
    %119 = arith.addf %115, %118 : vector<16x1xf32>
    %120 = math.rsqrt %119 : vector<16x1xf32>
    %121 = vector.broadcast %120 : vector<16x1xf32> to vector<16x32xf32>
    %122 = arith.mulf %117, %121 : vector<16x32xf32>
    %123 = arith.mulf %122, %12 : vector<16x32xf32>
    %124 = arith.addf %123, %14 : vector<16x32xf32>
    %c0_33 = arith.constant 0 : index
    %c0_34 = arith.constant 0 : index
    %125 = vector.load %arg4[%c0_33, %c0_34] : memref<16x32xf32, #tpu.memory_space<vmem>>, vector<16x32xf32>
    tpu.vector_store %arg4[%c0_33, %c0_34], %124 {strides = array<i32>} : memref<16x32xf32, #tpu.memory_space<vmem>>, vector<16x32xf32>,
    return
  }
}

</mosaic_0001>

<llo_original>
// kernel: cross_attention_block.1
$region0: #{cross_attention_block.1}
  #allocation0 [shape = 'u32[]', space=smem, size = 0x4, offset = 0x4, fixed_abs, tag = 'smem constant byte address 0x4 - core index']
  #allocation1 [shape = 'u32[144,128]{1,0:T(1,128)}', space=vmem, size = 0x12000, scoped, tag = 'internal scratch']
  %s0 = inlined_call_operand.vmem [shape: f32[48,32], index: 0, kind: input, shape index: {}]
  %s1 = inlined_call_operand.vmem [shape: f32[32,128], index: 1, kind: input, shape index: {}]
  %s2 = inlined_call_operand.vmem [shape: f32[96,64], index: 2, kind: input, shape index: {}]
  %s3 = inlined_call_operand.vmem [shape: f32[88,128], index: 3, kind: input, shape index: {}]
  %s4 = inlined_call_operand.hbm [shape: f32[16,32], index: 4, kind: output, shape index: {}]
  %s5 = sld [smem:[#allocation0]]
  $region26: #{cross_attention_block.1} parent=0
    _
  %s7 = ssub.s32 1, %s5
  %s8 = scalar_select 0, %s7, %s5
  $region1: #{cross_attention_block.1} parent=0
    #allocation2 [shape = 'u8[8192]{0}', space=vmem, size = 0x2000, scoped, tag = 'output window, operand 0, single buffered']
    #allocation3 [shape = 's32[1]{0}', space=sflag, size = 0x4, scoped, tag = 'scoped memory for cross_attention_block.1']
    %9 = vsyncpa [#allocation3], 0
    // Predicated region
    $region2: #{cross_attention_block.1} parent=1 // pred_check
      _
    $region3: #{cross_attention_block.1} parent=1 // pred_check_branch
      %11 = sbr.rel (0) target = $region5
    $region4: #{cross_attention_block.1} parent=1 // pred_region
      _
    $region5: #{cross_attention_block.1} parent=1 // pred_fallthru
      _
    // Predicated region
    $region6: #{cross_attention_block.1} parent=1 // pred_check
      _
    $region7: #{cross_attention_block.1} parent=1 // pred_check_branch
      %13 = sbr.rel (0) target = $region9
    $region8: #{cross_attention_block.1} parent=1 // pred_region
      _
    $region9: #{cross_attention_block.1} parent=1 // pred_fallthru
      _
    // Predicated region
    $region10: #{cross_attention_block.1} parent=1 // pred_check
      _
    $region11: #{cross_attention_block.1} parent=1 // pred_check_branch
      %15 = sbr.rel (0) target = $region13
    $region12: #{cross_attention_block.1} parent=1 // pred_region
      _
    $region13: #{cross_attention_block.1} parent=1 // pred_fallthru
      _
    // Predicated region
    $region14: #{cross_attention_block.1} parent=1 // pred_check
      _
    $region15: #{cross_attention_block.1} parent=1 // pred_check_branch
      %17 = sbr.rel (0) target = $region17
    $region16: #{cross_attention_block.1} parent=1 // pred_region
      _
    $region17: #{cross_attention_block.1} parent=1 // pred_fallthru
      _
    %v18 = vld [vmem:[%s3] sm:$0xff]
    %v19 = vld [vmem:[%s3 + $0x8] sm:$0xff]
    %v20 = vld [vmem:[%s3 + $0x10] sm:$0xff]
    %v21 = vld [vmem:[%s3 + $0x18] sm:$0xff]
    %v22 = vld [vmem:[%s3 + $0x20] sm:$0xff]
    %v23 = vld [vmem:[%s3 + $0x28] sm:$0xff]
    %v24 = vld [vmem:[%s3 + $0x30] sm:$0xff]
    %v25 = vld [vmem:[%s3 + $0x38] sm:$0xff]
    %v26 = vld [vmem:[%s3 + $0x40] sm:$0xff]
    %v27 = vld [vmem:[%s3 + $0x48] sm:$0xff]
    %v28 = vld [vmem:[%s3 + $0x50] sm:$0xff]
    %v29 = vlaneseq
    %v30 = vshrl.u32 %v29, 7
    %v31 = vsub.s32 6, %v30
    %v32 = vrot.slane %v18, %v31
    %v33 = vlaneseq
    %v34 = vshrl.u32 %v33, 7
    %v35 = vsub.s32 7, %v34
    %v36 = vrot.slane %v18, %v35
    %v37 = vld [vmem:[%s1] sm:$0xff]
    %v38 = vld [vmem:[%s1 + $0x8] sm:$0xff]
    %v39 = vld [vmem:[%s1 + $0x10] sm:$0xff]
    %v40 = vld [vmem:[%s1 + $0x18] sm:$0xff]
    %v41 = vld [vmem:[%s2] sm:$0xff]
    %v42 = vld [vmem:[%s2 + $0x8] sm:$0xff]
    %v43 = vld [vmem:[%s2 + $0x10] sm:$0xff]
    %v44 = vld [vmem:[%s2 + $0x18] sm:$0xff]
    %v45 = vld [vmem:[%s2 + $0x20] sm:$0xff]
    %v46 = vld [vmem:[%s2 + $0x28] sm:$0xff]
    %v47 = vld [vmem:[%s2 + $0x30] sm:$0xff]
    %v48 = vld [vmem:[%s2 + $0x38] sm:$0xff]
    %v49 = vld [vmem:[%s2 + $0x40] sm:$0xff]
    %v50 = vld [vmem:[%s2 + $0x48] sm:$0xff]
    %v51 = vld [vmem:[%s2 + $0x50] sm:$0xff]
    %v52 = vld [vmem:[%s2 + $0x58] sm:$0xff]
    %v53 = vld [vmem:[%s0] sm:$0xff]
    %v54 = vld [vmem:[%s0 + $0x8] sm:$0xff]
    %v55 = vld [vmem:[%s0 + $0x10] sm:$0xff]
    %v56 = vld [vmem:[%s0 + $0x18] sm:$0xff]
    %v57 = vld [vmem:[%s0 + $0x20] sm:$0xff]
    %v58 = vld [vmem:[%s0 + $0x28] sm:$0xff]
    %vm59 = vcmask 261120
    %v60 = vsel %vm59, %v53, 0.0
    %61 = vadd.xlane.f32.xlu0 %v60
    %v62 = vpop.xlane.xlu0 %61
    %v63 = vsel %vm59, %v54, 0.0
    %64 = vadd.xlane.f32.xlu0 %v63
    %v65 = vpop.xlane.xlu0 %64
    %v66 = vrcp.pop 32.0
    %v67 = vmul.f32 %v62, %v66
    %v68 = vmul.f32 %v65, %v66
    %v69 = vmul.f32 %v53, %v53
    %v70 = vmul.f32 %v54, %v54
    %v71 = vsel %vm59, %v69, 0.0
    %72 = vadd.xlane.f32.xlu0 %v71
    %v73 = vpop.xlane.xlu0 %72
    %v74 = vsel %vm59, %v70, 0.0
    %75 = vadd.xlane.f32.xlu0 %v74
    %v76 = vpop.xlane.xlu0 %75
    %v77 = vmul.f32 %v73, %v66
    %v78 = vmul.f32 %v76, %v66
    %v79 = vmul.f32 %v67, %v67
    %v80 = vmul.f32 %v68, %v68
    %v81 = vsub.f32 %v77, %v79
    %v82 = vsub.f32 %v78, %v80
    %v83 = vsub.f32 %v53, %v67
    %v84 = vsub.f32 %v54, %v68
    %v85 = vadd.f32 %v81, 1e-05
    %v86 = vadd.f32 %v82, 1e-05
    %v87 = vrsqrt.pop %v85
    %v88 = vrsqrt.pop %v86
    %v89 = vmul.f32 %v83, %v87
    %v90 = vmul.f32 %v84, %v88
    %v91 = vmul.f32 %v89, %v32
    %v92 = vmul.f32 %v90, %v32
    %v93 = vadd.f32 %v91, %v36
    %v94 = vadd.f32 %v92, %v36
    %v95 = vlaneseq
    %v96 = vshrl.u32 %v95, 7
    %v97 = vsub.s32 0, %v96
    %v98 = vrot.slane %v18, %v97
    %v100 = vsel %vm59, %v93, 0
    %v103 = vsel %vm59, %v94, 0
    %105 = vmatprep.subr.mxu0 0.0
    %106 = vmatpush1.msra.mxu0 0.0
    %107 = vmatprep.subr.mxu0 0.0
    %108 = vmatpush1.msra.mxu0 0.0
    %109 = vmatprep.subr.mxu0 0.0
    %110 = vmatpush1.msra.mxu0 0.0
    %111 = vmatprep.subr.mxu0 0.0
    %112 = vmatpush1.msra.mxu0 0.0
    %113 = vmatprep.subr.mxu0 0.0
    %114 = vmatpush1.msra.mxu0 0.0
    %115 = vmatprep.subr.mxu0 0.0
    %116 = vmatpush1.msra.mxu0 0.0
    %117 = vmatprep.subr.mxu0 0.0
    %118 = vmatpush1.msra.mxu0 0.0
    %119 = vmatprep.subr.mxu0 0.0
    %120 = vmatpush1.msra.mxu0 0.0
    %121 = vmatprep.subr.mxu0 0.0
    %122 = vmatpush1.msra.mxu0 0.0
    %123 = vmatprep.subr.mxu0 0.0
    %124 = vmatpush1.msra.mxu0 0.0
    %125 = vmatprep.subr.mxu0 0.0
    %126 = vmatpush1.msra.mxu0 0.0
    %127 = vmatprep.subr.mxu0 0.0
    %128 = vmatpush1.msra.mxu0 0.0
    %129 = vmatprep.subr.mxu0 0.0
    %130 = vmatpush1.msra.mxu0 %v40
    %131 = vmatprep.subr.mxu0 0.0
    %132 = vmatpush1.msra.mxu0 %v39
    %133 = vmatprep.subr.mxu0 0.0
    %134 = vmatpush1.msra.mxu0 %v38
    %135 = vmatprep.subr.mxu0 0.0
    %136 = vmatpush1.msra.mxu0 %v37
    %137 = vmatprep.subr.mxu0 0.0
    %138 = vmatpush2.msra.mxu0 0.0
    %139 = vmatprep.subr.mxu0 0.0
    %140 = vmatpush2.msra.mxu0 0.0
    %141 = vmatprep.subr.mxu0 0.0
    %142 = vmatpush2.msra.mxu0 0.0
    %143 = vmatprep.subr.mxu0 0.0
    %144 = vmatpush2.msra.mxu0 0.0
    %145 = vmatprep.subr.mxu0 0.0
    %146 = vmatpush2.msra.mxu0 0.0
    %147 = vmatprep.subr.mxu0 0.0
    %148 = vmatpush2.msra.mxu0 0.0
    %149 = vmatprep.subr.mxu0 0.0
    %150 = vmatpush2.msra.mxu0 0.0
    %151 = vmatprep.subr.mxu0 0.0
    %152 = vmatpush2.msra.mxu0 0.0
    %153 = vmatprep.subr.mxu0 0.0
    %154 = vmatpush2.msra.mxu0 0.0
    %155 = vmatprep.subr.mxu0 0.0
    %156 = vmatpush2.msra.mxu0 0.0
    %157 = vmatprep.subr.mxu0 0.0
    %158 = vmatpush2.msra.mxu0 0.0
    %159 = vmatprep.subr.mxu0 0.0
    %160 = vmatpush2.msra.mxu0 0.0
    %161 = vmatprep.subr.mxu0 0.0
    %162 = vmatpush2.msra.mxu0 0.0
    %163 = vmatprep.subr.mxu0 0.0
    %164 = vmatpush2.msra.mxu0 0.0
    %165 = vmatprep.subr.mxu0 0.0
    %166 = vmatpush2.msra.mxu0 0.0
    %167 = vmatprep.subr.mxu0 0.0
    %168 = vmatpush2.msra.mxu0 0.0
    %169 = vmatprep.mubr.f32.mxu0 0.0
    %170 = vmatmul.mubr.f32.gmra.mxu0 %v100
    %v171 = vpop.f32.mrf.mxu0
    %v172 = vadd.f32 %v98, %v171
    %v173 = vpop.f32.mrf.mxu0
    %174 = vmatprep.mubr.f32.mxu0 0.0
    %175 = vmatmul.mubr.f32.gmra.mxu0 %v103
    %v176 = vpop.f32.mrf.mxu0
    %v177 = vadd.f32 %v98, %v176
    %v178 = vpop.f32.mrf.mxu0
    %179 = vdwg.mxu0
    %v180 = vlaneseq
    %v181 = vshrl.u32 %v180, 7
    %v182 = vsub.s32 1, %v181
    %v183 = vrot.slane %v18, %v182
    %188 = vrot.lane.b32.xlu0 %v37, 96
    %v189 = vpop.permute.xlu0 %188
    %190 = vrot.lane.b32.xlu0 %v38, 96
    %v191 = vpop.permute.xlu0 %190
    %192 = vrot.lane.b32.xlu0 %v39, 96
    %v193 = vpop.permute.xlu0 %192
    %194 = vrot.lane.b32.xlu0 %v40, 96
    %v195 = vpop.permute.xlu0 %194
    %v201 = vsel %vm59, %v55, 0
    %v204 = vsel %vm59, %v56, 0
    %206 = vmatprep.subr.mxu0 0.0
    %207 = vmatpush1.msra.mxu0 0.0
    %208 = vmatprep.subr.mxu0 0.0
    %209 = vmatpush1.msra.mxu0 0.0
    %210 = vmatprep.subr.mxu0 0.0
    %211 = vmatpush1.msra.mxu0 0.0
    %212 = vmatprep.subr.mxu0 0.0
    %213 = vmatpush1.msra.mxu0 0.0
    %214 = vmatprep.subr.mxu0 0.0
    %215 = vmatpush1.msra.mxu0 0.0
    %216 = vmatprep.subr.mxu0 0.0
    %217 = vmatpush1.msra.mxu0 0.0
    %218 = vmatprep.subr.mxu0 0.0
    %219 = vmatpush1.msra.mxu0 0.0
    %220 = vmatprep.subr.mxu0 0.0
    %221 = vmatpush1.msra.mxu0 0.0
    %222 = vmatprep.subr.mxu0 0.0
    %223 = vmatpush1.msra.mxu0 0.0
    %224 = vmatprep.subr.mxu0 0.0
    %225 = vmatpush1.msra.mxu0 0.0
    %226 = vmatprep.subr.mxu0 0.0
    %227 = vmatpush1.msra.mxu0 0.0
    %228 = vmatprep.subr.mxu0 0.0
    %229 = vmatpush1.msra.mxu0 0.0
    %230 = vmatprep.subr.mxu0 0.0
    %231 = vmatpush1.msra.mxu0 %v195
    %232 = vmatprep.subr.mxu0 0.0
    %233 = vmatpush1.msra.mxu0 %v193
    %234 = vmatprep.subr.mxu0 0.0
    %235 = vmatpush1.msra.mxu0 %v191
    %236 = vmatprep.subr.mxu0 0.0
    %237 = vmatpush1.msra.mxu0 %v189
    %238 = vmatprep.subr.mxu0 0.0
    %239 = vmatpush2.msra.mxu0 0.0
    %240 = vmatprep.subr.mxu0 0.0
    %241 = vmatpush2.msra.mxu0 0.0
    %242 = vmatprep.subr.mxu0 0.0
    %243 = vmatpush2.msra.mxu0 0.0
    %244 = vmatprep.subr.mxu0 0.0
    %245 = vmatpush2.msra.mxu0 0.0
    %246 = vmatprep.subr.mxu0 0.0
    %247 = vmatpush2.msra.mxu0 0.0
    %248 = vmatprep.subr.mxu0 0.0
    %249 = vmatpush2.msra.mxu0 0.0
    %250 = vmatprep.subr.mxu0 0.0
    %251 = vmatpush2.msra.mxu0 0.0
    %252 = vmatprep.subr.mxu0 0.0
    %253 = vmatpush2.msra.mxu0 0.0
    %254 = vmatprep.subr.mxu0 0.0
    %255 = vmatpush2.msra.mxu0 0.0
    %256 = vmatprep.subr.mxu0 0.0
    %257 = vmatpush2.msra.mxu0 0.0
    %258 = vmatprep.subr.mxu0 0.0
    %259 = vmatpush2.msra.mxu0 0.0
    %260 = vmatprep.subr.mxu0 0.0
    %261 = vmatpush2.msra.mxu0 0.0
    %262 = vmatprep.subr.mxu0 0.0
    %263 = vmatpush2.msra.mxu0 0.0
    %264 = vmatprep.subr.mxu0 0.0
    %265 = vmatpush2.msra.mxu0 0.0
    %266 = vmatprep.subr.mxu0 0.0
    %267 = vmatpush2.msra.mxu0 0.0
    %268 = vmatprep.subr.mxu0 0.0
    %269 = vmatpush2.msra.mxu0 0.0
    %270 = vmatprep.mubr.f32.mxu0 0.0
    %271 = vmatmul.mubr.f32.gmra.mxu0 %v201
    %v272 = vpop.f32.mrf.mxu0
    %v273 = vadd.f32 %v183, %v272
    %v274 = vpop.f32.mrf.mxu0
    %275 = vmatprep.mubr.f32.mxu0 0.0
    %276 = vmatmul.mubr.f32.gmra.mxu0 %v204
    %v277 = vpop.f32.mrf.mxu0
    %v278 = vadd.f32 %v183, %v277
    %v279 = vpop.f32.mrf.mxu0
    %280 = vdwg.mxu0
    %v281 = vlaneseq
    %v282 = vshrl.u32 %v281, 7
    %v283 = vsub.s32 2, %v282
    %v284 = vrot.slane %v18, %v283
    %285 = vrot.lane.b32.xlu0 %v37, 64
    %v286 = vpop.permute.xlu0 %285
    %287 = vrot.lane.b32.xlu0 %v38, 64
    %v288 = vpop.permute.xlu0 %287
    %289 = vrot.lane.b32.xlu0 %v39, 64
    %v290 = vpop.permute.xlu0 %289
    %291 = vrot.lane.b32.xlu0 %v40, 64
    %v292 = vpop.permute.xlu0 %291
    %v298 = vsel %vm59, %v57, 0
    %v301 = vsel %vm59, %v58, 0
    %303 = vmatprep.subr.mxu0 0.0
    %304 = vmatpush1.msra.mxu0 0.0
    %305 = vmatprep.subr.mxu0 0.0
    %306 = vmatpush1.msra.mxu0 0.0
    %307 = vmatprep.subr.mxu0 0.0
    %308 = vmatpush1.msra.mxu0 0.0
    %309 = vmatprep.subr.mxu0 0.0
    %310 = vmatpush1.msra.mxu0 0.0
    %311 = vmatprep.subr.mxu0 0.0
    %312 = vmatpush1.msra.mxu0 0.0
    %313 = vmatprep.subr.mxu0 0.0
    %314 = vmatpush1.msra.mxu0 0.0
    %315 = vmatprep.subr.mxu0 0.0
    %316 = vmatpush1.msra.mxu0 0.0
    %317 = vmatprep.subr.mxu0 0.0
    %318 = vmatpush1.msra.mxu0 0.0
    %319 = vmatprep.subr.mxu0 0.0
    %320 = vmatpush1.msra.mxu0 0.0
    %321 = vmatprep.subr.mxu0 0.0
    %322 = vmatpush1.msra.mxu0 0.0
    %323 = vmatprep.subr.mxu0 0.0
    %324 = vmatpush1.msra.mxu0 0.0
    %325 = vmatprep.subr.mxu0 0.0
    %326 = vmatpush1.msra.mxu0 0.0
    %327 = vmatprep.subr.mxu0 0.0
    %328 = vmatpush1.msra.mxu0 %v292
    %329 = vmatprep.subr.mxu0 0.0
    %330 = vmatpush1.msra.mxu0 %v290
    %331 = vmatprep.subr.mxu0 0.0
    %332 = vmatpush1.msra.mxu0 %v288
    %333 = vmatprep.subr.mxu0 0.0
    %334 = vmatpush1.msra.mxu0 %v286
    %335 = vmatprep.subr.mxu0 0.0
    %336 = vmatpush2.msra.mxu0 0.0
    %337 = vmatprep.subr.mxu0 0.0
    %338 = vmatpush2.msra.mxu0 0.0
    %339 = vmatprep.subr.mxu0 0.0
    %340 = vmatpush2.msra.mxu0 0.0
    %341 = vmatprep.subr.mxu0 0.0
    %342 = vmatpush2.msra.mxu0 0.0
    %343 = vmatprep.subr.mxu0 0.0
    %344 = vmatpush2.msra.mxu0 0.0
    %345 = vmatprep.subr.mxu0 0.0
    %346 = vmatpush2.msra.mxu0 0.0
    %347 = vmatprep.subr.mxu0 0.0
    %348 = vmatpush2.msra.mxu0 0.0
    %349 = vmatprep.subr.mxu0 0.0
    %350 = vmatpush2.msra.mxu0 0.0
    %351 = vmatprep.subr.mxu0 0.0
    %352 = vmatpush2.msra.mxu0 0.0
    %353 = vmatprep.subr.mxu0 0.0
    %354 = vmatpush2.msra.mxu0 0.0
    %355 = vmatprep.subr.mxu0 0.0
    %356 = vmatpush2.msra.mxu0 0.0
    %357 = vmatprep.subr.mxu0 0.0
    %358 = vmatpush2.msra.mxu0 0.0
    %359 = vmatprep.subr.mxu0 0.0
    %360 = vmatpush2.msra.mxu0 0.0
    %361 = vmatprep.subr.mxu0 0.0
    %362 = vmatpush2.msra.mxu0 0.0
    %363 = vmatprep.subr.mxu0 0.0
    %364 = vmatpush2.msra.mxu0 0.0
    %365 = vmatprep.subr.mxu0 0.0
    %366 = vmatpush2.msra.mxu0 0.0
    %367 = vmatprep.mubr.f32.mxu0 0.0
    %368 = vmatmul.mubr.f32.gmra.mxu0 %v298
    %v369 = vpop.f32.mrf.mxu0
    %v370 = vadd.f32 %v284, %v369
    %v371 = vpop.f32.mrf.mxu0
    %372 = vmatprep.mubr.f32.mxu0 0.0
    %373 = vmatmul.mubr.f32.gmra.mxu0 %v301
    %v374 = vpop.f32.mrf.mxu0
    %v375 = vadd.f32 %v284, %v374
    %v376 = vpop.f32.mrf.mxu0
    %377 = vdwg.mxu0
    %v378 = vmul.f32 %v273, %v21
    %v379 = vmul.f32 %v278, %v22
    %v380 = vmul.f32 %v273, %v23
    %v381 = vmul.f32 %v278, %v24
    %v382 = vmul.f32 %v273, %v25
    %v383 = vmul.f32 %v278, %v26
    %v384 = vmul.f32 %v273, %v27
    %v385 = vmul.f32 %v278, %v28
    %v386 = vmul.f32 %v370, %v21
    %v387 = vmul.f32 %v375, %v22
    %v388 = vmul.f32 %v370, %v23
    %v389 = vmul.f32 %v375, %v24
    %v390 = vmul.f32 %v370, %v25
    %v391 = vmul.f32 %v375, %v26
    %v392 = vmul.f32 %v370, %v27
    %v393 = vmul.f32 %v375, %v28
    %v395 = vsel %vm59, %v172, 0
    %v398 = vsel %vm59, %v177, 0
    %v401 = vsel %vm59, %v378, 0
    %v404 = vsel %vm59, %v379, 0
    %v407 = vsel %vm59, %v380, 0
    %v410 = vsel %vm59, %v381, 0
    %v413 = vsel %vm59, %v382, 0
    %v416 = vsel %vm59, %v383, 0
    %v419 = vsel %vm59, %v384, 0
    %v422 = vsel %vm59, %v385, 0
    %424 = vmatprep.subr.mxu0 0.0
    %425 = vmatpush1.xpose.msra.mxu0 0.0
    %426 = vmatprep.subr.mxu0 0.0
    %427 = vmatpush1.xpose.msra.mxu0 0.0
    %428 = vmatprep.subr.mxu0 0.0
    %429 = vmatpush1.xpose.msra.mxu0 0.0
    %430 = vmatprep.subr.mxu0 0.0
    %431 = vmatpush1.xpose.msra.mxu0 0.0
    %432 = vmatprep.subr.mxu0 0.0
    %433 = vmatpush1.xpose.msra.mxu0 0.0
    %434 = vmatprep.subr.mxu0 0.0
    %435 = vmatpush1.xpose.msra.mxu0 0.0
    %436 = vmatprep.subr.mxu0 0.0
    %437 = vmatpush1.xpose.msra.mxu0 0.0
    %438 = vmatprep.subr.mxu0 0.0
    %439 = vmatpush1.xpose.msra.mxu0 0.0
    %440 = vmatprep.subr.mxu0 0.0
    %441 = vmatpush1.xpose.msra.mxu0 %v422
    %442 = vmatprep.subr.mxu0 0.0
    %443 = vmatpush1.xpose.msra.mxu0 %v419
    %444 = vmatprep.subr.mxu0 0.0
    %445 = vmatpush1.xpose.msra.mxu0 %v416
    %446 = vmatprep.subr.mxu0 0.0
    %447 = vmatpush1.xpose.msra.mxu0 %v413
    %448 = vmatprep.subr.mxu0 0.0
    %449 = vmatpush1.xpose.msra.mxu0 %v410
    %450 = vmatprep.subr.mxu0 0.0
    %451 = vmatpush1.xpose.msra.mxu0 %v407
    %452 = vmatprep.subr.mxu0 0.0
    %453 = vmatpush1.xpose.msra.mxu0 %v404
    %454 = vmatprep.subr.mxu0 0.0
    %455 = vmatpush1.xpose.msra.mxu0 %v401
    %456 = vmatprep.subr.mxu0 0.0
    %457 = vmatpush2.xpose.msra.mxu0 0.0
    %458 = vmatprep.subr.mxu0 0.0
    %459 = vmatpush2.xpose.msra.mxu0 0.0
    %460 = vmatprep.subr.mxu0 0.0
    %461 = vmatpush2.xpose.msra.mxu0 0.0
    %462 = vmatprep.subr.mxu0 0.0
    %463 = vmatpush2.xpose.msra.mxu0 0.0
    %464 = vmatprep.subr.mxu0 0.0
    %465 = vmatpush2.xpose.msra.mxu0 0.0
    %466 = vmatprep.subr.mxu0 0.0
    %467 = vmatpush2.xpose.msra.mxu0 0.0
    %468 = vmatprep.subr.mxu0 0.0
    %469 = vmatpush2.xpose.msra.mxu0 0.0
    %470 = vmatprep.subr.mxu0 0.0
    %471 = vmatpush2.xpose.msra.mxu0 0.0
    %472 = vmatprep.subr.mxu0 0.0
    %473 = vmatpush2.xpose.msra.mxu0 0.0
    %474 = vmatprep.subr.mxu0 0.0
    %475 = vmatpush2.xpose.msra.mxu0 0.0
    %476 = vmatprep.subr.mxu0 0.0
    %477 = vmatpush2.xpose.msra.mxu0 0.0
    %478 = vmatprep.subr.mxu0 0.0
    %479 = vmatpush2.xpose.msra.mxu0 0.0
    %480 = vmatprep.subr.mxu0 0.0
    %481 = vmatpush2.xpose.msra.mxu0 0.0
    %482 = vmatprep.subr.mxu0 0.0
    %483 = vmatpush2.xpose.msra.mxu0 0.0
    %484 = vmatprep.subr.mxu0 0.0
    %485 = vmatpush2.xpose.msra.mxu0 0.0
    %486 = vmatprep.subr.mxu0 0.0
    %487 = vmatpush2.xpose.msra.mxu0 0.0
    %488 = vmatprep.mubr.f32.mxu0 0.0
    %489 = vmatmul.mubr.f32.gmra.mxu0 %v395
    %v490 = vpop.f32.mrf.mxu0
    %v491 = vadd.f32 %v19, %v490
    %v492 = vpop.f32.mrf.mxu0
    %493 = vmatprep.mubr.f32.mxu0 0.0
    %494 = vmatmul.mubr.f32.gmra.mxu0 %v398
    %v495 = vpop.f32.mrf.mxu0
    %v496 = vadd.f32 %v20, %v495
    %v497 = vpop.f32.mrf.mxu0
    %498 = vdwg.mxu0
    %vm499 = vcmask 523264
    %v500 = vsel %vm499, %v491, -inf
    %501 = vmax.xlane.f32.xlu0 %v500
    %v502 = vpop.xlane.xlu0 %501
    %v503 = vsel %vm499, %v496, -inf
    %504 = vmax.xlane.f32.xlu0 %v503
    %v505 = vpop.xlane.xlu0 %504
    %v506 = vsub.f32 %v491, %v502
    %v507 = vsub.f32 %v496, %v505
    %v508 = vmul.f32 %v506, 1.442695
    %v509 = vpow.pop %v508
    %v510 = vmul.f32 %v507, 1.442695
    %v511 = vpow.pop %v510
    %520 = vrot.lane.b32.xlu0 %v21, 32
    %v521 = vpop.permute.xlu0 %520
    %522 = vrot.lane.b32.xlu0 %v22, 32
    %v523 = vpop.permute.xlu0 %522
    %524 = vrot.lane.b32.xlu0 %v23, 32
    %v525 = vpop.permute.xlu0 %524
    %526 = vrot.lane.b32.xlu0 %v24, 32
    %v527 = vpop.permute.xlu0 %526
    %528 = vrot.lane.b32.xlu0 %v25, 32
    %v529 = vpop.permute.xlu0 %528
    %530 = vrot.lane.b32.xlu0 %v26, 32
    %v531 = vpop.permute.xlu0 %530
    %532 = vrot.lane.b32.xlu0 %v27, 32
    %v533 = vpop.permute.xlu0 %532
    %534 = vrot.lane.b32.xlu0 %v28, 32
    %v535 = vpop.permute.xlu0 %534
    %v544 = vsel %vm59, %v386, %v521
    %v545 = vsel %vm59, %v387, %v523
    %v546 = vsel %vm59, %v388, %v525
    %v547 = vsel %vm59, %v389, %v527
    %v548 = vsel %vm59, %v390, %v529
    %v549 = vsel %vm59, %v391, %v531
    %v550 = vsel %vm59, %v392, %v533
    %v551 = vsel %vm59, %v393, %v535
    %v553 = vsel %vm499, %v509, 0
    %v556 = vsel %vm499, %v511, 0
    %558 = vmatprep.subr.mxu0 0.0
    %559 = vmatpush1.msra.mxu0 0.0
    %560 = vmatprep.subr.mxu0 0.0
    %561 = vmatpush1.msra.mxu0 0.0
    %562 = vmatprep.subr.mxu0 0.0
    %563 = vmatpush1.msra.mxu0 0.0
    %564 = vmatprep.subr.mxu0 0.0
    %565 = vmatpush1.msra.mxu0 0.0
    %566 = vmatprep.subr.mxu0 0.0
    %567 = vmatpush1.msra.mxu0 0.0
    %568 = vmatprep.subr.mxu0 0.0
    %569 = vmatpush1.msra.mxu0 0.0
    %570 = vmatprep.subr.mxu0 0.0
    %571 = vmatpush1.msra.mxu0 0.0
    %572 = vmatprep.subr.mxu0 0.0
    %573 = vmatpush1.msra.mxu0 0.0
    %574 = vmatprep.subr.mxu0 0.0
    %575 = vmatpush1.msra.mxu0 %v551
    %576 = vmatprep.subr.mxu0 0.0
    %577 = vmatpush1.msra.mxu0 %v550
    %578 = vmatprep.subr.mxu0 0.0
    %579 = vmatpush1.msra.mxu0 %v549
    %580 = vmatprep.subr.mxu0 0.0
    %581 = vmatpush1.msra.mxu0 %v548
    %582 = vmatprep.subr.mxu0 0.0
    %583 = vmatpush1.msra.mxu0 %v547
    %584 = vmatprep.subr.mxu0 0.0
    %585 = vmatpush1.msra.mxu0 %v546
    %586 = vmatprep.subr.mxu0 0.0
    %587 = vmatpush1.msra.mxu0 %v545
    %588 = vmatprep.subr.mxu0 0.0
    %589 = vmatpush1.msra.mxu0 %v544
    %590 = vmatprep.subr.mxu0 0.0
    %591 = vmatpush2.msra.mxu0 0.0
    %592 = vmatprep.subr.mxu0 0.0
    %593 = vmatpush2.msra.mxu0 0.0
    %594 = vmatprep.subr.mxu0 0.0
    %595 = vmatpush2.msra.mxu0 0.0
    %596 = vmatprep.subr.mxu0 0.0
    %597 = vmatpush2.msra.mxu0 0.0
    %598 = vmatprep.subr.mxu0 0.0
    %599 = vmatpush2.msra.mxu0 0.0
    %600 = vmatprep.subr.mxu0 0.0
    %601 = vmatpush2.msra.mxu0 0.0
    %602 = vmatprep.subr.mxu0 0.0
    %603 = vmatpush2.msra.mxu0 0.0
    %604 = vmatprep.subr.mxu0 0.0
    %605 = vmatpush2.msra.mxu0 0.0
    %606 = vmatprep.subr.mxu0 0.0
    %607 = vmatpush2.msra.mxu0 0.0
    %608 = vmatprep.subr.mxu0 0.0
    %609 = vmatpush2.msra.mxu0 0.0
    %610 = vmatprep.subr.mxu0 0.0
    %611 = vmatpush2.msra.mxu0 0.0
    %612 = vmatprep.subr.mxu0 0.0
    %613 = vmatpush2.msra.mxu0 0.0
    %614 = vmatprep.subr.mxu0 0.0
    %615 = vmatpush2.msra.mxu0 0.0
    %616 = vmatprep.subr.mxu0 0.0
    %617 = vmatpush2.msra.mxu0 0.0
    %618 = vmatprep.subr.mxu0 0.0
    %619 = vmatpush2.msra.mxu0 0.0
    %620 = vmatprep.subr.mxu0 0.0
    %621 = vmatpush2.msra.mxu0 0.0
    %622 = vmatprep.mubr.f32.mxu0 0.0
    %623 = vmatmul.mubr.f32.gmra.mxu0 %v553
    %v624 = vpop.f32.mrf.mxu0
    %v625 = vadd.f32 0.0, %v624
    %v626 = vpop.f32.mrf.mxu0
    %627 = vmatprep.mubr.f32.mxu0 0.0
    %628 = vmatmul.mubr.f32.gmra.mxu0 %v556
    %v629 = vpop.f32.mrf.mxu0
    %v630 = vadd.f32 0.0, %v629
    %v631 = vpop.f32.mrf.mxu0
    %632 = vdwg.mxu0
    %v633 = vrcp.pop %v625
    %v634 = vrcp.pop %v630
    %637 = vrot.lane.b32.xlu0 %v633, 96
    %v638 = vpop.permute.xlu0 %637
    %639 = vrot.lane.b32.xlu0 %v634, 96
    %v640 = vpop.permute.xlu0 %639
    %v643 = vmul.f32 %v625, %v638
    %v644 = vmul.f32 %v630, %v640
    %v645 = vlaneseq
    %v646 = vshrl.u32 %v645, 7
    %v647 = vsub.s32 3, %v646
    %v648 = vrot.slane %v18, %v647
    %649 = vrot.lane.b32.xlu0 %v37, 32
    %v650 = vpop.permute.xlu0 %649
    %651 = vrot.lane.b32.xlu0 %v38, 32
    %v652 = vpop.permute.xlu0 %651
    %653 = vrot.lane.b32.xlu0 %v39, 32
    %v654 = vpop.permute.xlu0 %653
    %655 = vrot.lane.b32.xlu0 %v40, 32
    %v656 = vpop.permute.xlu0 %655
    %v662 = vsel %vm59, %v643, 0
    %v665 = vsel %vm59, %v644, 0
    %667 = vmatprep.subr.mxu0 0.0
    %668 = vmatpush1.msra.mxu0 0.0
    %669 = vmatprep.subr.mxu0 0.0
    %670 = vmatpush1.msra.mxu0 0.0
    %671 = vmatprep.subr.mxu0 0.0
    %672 = vmatpush1.msra.mxu0 0.0
    %673 = vmatprep.subr.mxu0 0.0
    %674 = vmatpush1.msra.mxu0 0.0
    %675 = vmatprep.subr.mxu0 0.0
    %676 = vmatpush1.msra.mxu0 0.0
    %677 = vmatprep.subr.mxu0 0.0
    %678 = vmatpush1.msra.mxu0 0.0
    %679 = vmatprep.subr.mxu0 0.0
    %680 = vmatpush1.msra.mxu0 0.0
    %681 = vmatprep.subr.mxu0 0.0
    %682 = vmatpush1.msra.mxu0 0.0
    %683 = vmatprep.subr.mxu0 0.0
    %684 = vmatpush1.msra.mxu0 0.0
    %685 = vmatprep.subr.mxu0 0.0
    %686 = vmatpush1.msra.mxu0 0.0
    %687 = vmatprep.subr.mxu0 0.0
    %688 = vmatpush1.msra.mxu0 0.0
    %689 = vmatprep.subr.mxu0 0.0
    %690 = vmatpush1.msra.mxu0 0.0
    %691 = vmatprep.subr.mxu0 0.0
    %692 = vmatpush1.msra.mxu0 %v656
    %693 = vmatprep.subr.mxu0 0.0
    %694 = vmatpush1.msra.mxu0 %v654
    %695 = vmatprep.subr.mxu0 0.0
    %696 = vmatpush1.msra.mxu0 %v652
    %697 = vmatprep.subr.mxu0 0.0
    %698 = vmatpush1.msra.mxu0 %v650
    %699 = vmatprep.subr.mxu0 0.0
    %700 = vmatpush2.msra.mxu0 0.0
    %701 = vmatprep.subr.mxu0 0.0
    %702 = vmatpush2.msra.mxu0 0.0
    %703 = vmatprep.subr.mxu0 0.0
    %704 = vmatpush2.msra.mxu0 0.0
    %705 = vmatprep.subr.mxu0 0.0
    %706 = vmatpush2.msra.mxu0 0.0
    %707 = vmatprep.subr.mxu0 0.0
    %708 = vmatpush2.msra.mxu0 0.0
    %709 = vmatprep.subr.mxu0 0.0
    %710 = vmatpush2.msra.mxu0 0.0
    %711 = vmatprep.subr.mxu0 0.0
    %712 = vmatpush2.msra.mxu0 0.0
    %713 = vmatprep.subr.mxu0 0.0
    %714 = vmatpush2.msra.mxu0 0.0
    %715 = vmatprep.subr.mxu0 0.0
    %716 = vmatpush2.msra.mxu0 0.0
    %717 = vmatprep.subr.mxu0 0.0
    %718 = vmatpush2.msra.mxu0 0.0
    %719 = vmatprep.subr.mxu0 0.0
    %720 = vmatpush2.msra.mxu0 0.0
    %721 = vmatprep.subr.mxu0 0.0
    %722 = vmatpush2.msra.mxu0 0.0
    %723 = vmatprep.subr.mxu0 0.0
    %724 = vmatpush2.msra.mxu0 0.0
    %725 = vmatprep.subr.mxu0 0.0
    %726 = vmatpush2.msra.mxu0 0.0
    %727 = vmatprep.subr.mxu0 0.0
    %728 = vmatpush2.msra.mxu0 0.0
    %729 = vmatprep.subr.mxu0 0.0
    %730 = vmatpush2.msra.mxu0 0.0
    %731 = vmatprep.mubr.f32.mxu0 0.0
    %732 = vmatmul.mubr.f32.gmra.mxu0 %v662
    %v733 = vpop.f32.mrf.mxu0
    %v734 = vadd.f32 %v648, %v733
    %v735 = vpop.f32.mrf.mxu0
    %736 = vmatprep.mubr.f32.mxu0 0.0
    %737 = vmatmul.mubr.f32.gmra.mxu0 %v665
    %v738 = vpop.f32.mrf.mxu0
    %v739 = vadd.f32 %v648, %v738
    %v740 = vpop.f32.mrf.mxu0
    %741 = vdwg.mxu0
    %v742 = vadd.f32 %v53, %v734
    %v743 = vadd.f32 %v54, %v739
    %v744 = vsel %vm59, %v742, 0.0
    %745 = vadd.xlane.f32.xlu0 %v744
    %v746 = vpop.xlane.xlu0 %745
    %v747 = vsel %vm59, %v743, 0.0
    %748 = vadd.xlane.f32.xlu0 %v747
    %v749 = vpop.xlane.xlu0 %748
    %v750 = vmul.f32 %v746, %v66
    %v751 = vmul.f32 %v749, %v66
    %v752 = vmul.f32 %v742, %v742
    %v753 = vmul.f32 %v743, %v743
    %v754 = vsel %vm59, %v752, 0.0
    %755 = vadd.xlane.f32.xlu0 %v754
    %v756 = vpop.xlane.xlu0 %755
    %v757 = vsel %vm59, %v753, 0.0
    %758 = vadd.xlane.f32.xlu0 %v757
    %v759 = vpop.xlane.xlu0 %758
    %v760 = vmul.f32 %v756, %v66
    %v761 = vmul.f32 %v759, %v66
    %v762 = vmul.f32 %v750, %v750
    %v763 = vmul.f32 %v751, %v751
    %v764 = vsub.f32 %v760, %v762
    %v765 = vsub.f32 %v761, %v763
    %v766 = vsub.f32 %v742, %v750
    %v767 = vsub.f32 %v743, %v751
    %v768 = vadd.f32 %v764, 1e-05
    %v769 = vadd.f32 %v765, 1e-05
    %v770 = vrsqrt.pop %v768
    %v771 = vrsqrt.pop %v769
    %v772 = vmul.f32 %v766, %v770
    %v773 = vmul.f32 %v767, %v771
    %v774 = vmul.f32 %v772, %v32
    %v775 = vmul.f32 %v773, %v32
    %v776 = vadd.f32 %v774, %v36
    %v777 = vadd.f32 %v775, %v36
    %v778 = vlaneseq
    %v779 = vshrl.u32 %v778, 7
    %v780 = vsub.s32 4, %v779
    %v781 = vrot.slane %v18, %v780
    %v783 = vsel %vm59, %v776, 0
    %v786 = vsel %vm59, %v777, 0
    %788 = vmatprep.subr.mxu0 0.0
    %789 = vmatpush1.msra.mxu0 0.0
    %790 = vmatprep.subr.mxu0 0.0
    %791 = vmatpush1.msra.mxu0 0.0
    %792 = vmatprep.subr.mxu0 0.0
    %793 = vmatpush1.msra.mxu0 0.0
    %794 = vmatprep.subr.mxu0 0.0
    %795 = vmatpush1.msra.mxu0 0.0
    %796 = vmatprep.subr.mxu0 0.0
    %797 = vmatpush1.msra.mxu0 0.0
    %798 = vmatprep.subr.mxu0 0.0
    %799 = vmatpush1.msra.mxu0 0.0
    %800 = vmatprep.subr.mxu0 0.0
    %801 = vmatpush1.msra.mxu0 0.0
    %802 = vmatprep.subr.mxu0 0.0
    %803 = vmatpush1.msra.mxu0 0.0
    %804 = vmatprep.subr.mxu0 0.0
    %805 = vmatpush1.msra.mxu0 0.0
    %806 = vmatprep.subr.mxu0 0.0
    %807 = vmatpush1.msra.mxu0 0.0
    %808 = vmatprep.subr.mxu0 0.0
    %809 = vmatpush1.msra.mxu0 0.0
    %810 = vmatprep.subr.mxu0 0.0
    %811 = vmatpush1.msra.mxu0 0.0
    %812 = vmatprep.subr.mxu0 0.0
    %813 = vmatpush1.msra.mxu0 %v44
    %814 = vmatprep.subr.mxu0 0.0
    %815 = vmatpush1.msra.mxu0 %v43
    %816 = vmatprep.subr.mxu0 0.0
    %817 = vmatpush1.msra.mxu0 %v42
    %818 = vmatprep.subr.mxu0 0.0
    %819 = vmatpush1.msra.mxu0 %v41
    %820 = vmatprep.subr.mxu0 0.0
    %821 = vmatpush2.msra.mxu0 0.0
    %822 = vmatprep.subr.mxu0 0.0
    %823 = vmatpush2.msra.mxu0 0.0
    %824 = vmatprep.subr.mxu0 0.0
    %825 = vmatpush2.msra.mxu0 0.0
    %826 = vmatprep.subr.mxu0 0.0
    %827 = vmatpush2.msra.mxu0 0.0
    %828 = vmatprep.subr.mxu0 0.0
    %829 = vmatpush2.msra.mxu0 0.0
    %830 = vmatprep.subr.mxu0 0.0
    %831 = vmatpush2.msra.mxu0 0.0
    %832 = vmatprep.subr.mxu0 0.0
    %833 = vmatpush2.msra.mxu0 0.0
    %834 = vmatprep.subr.mxu0 0.0
    %835 = vmatpush2.msra.mxu0 0.0
    %836 = vmatprep.subr.mxu0 0.0
    %837 = vmatpush2.msra.mxu0 0.0
    %838 = vmatprep.subr.mxu0 0.0
    %839 = vmatpush2.msra.mxu0 0.0
    %840 = vmatprep.subr.mxu0 0.0
    %841 = vmatpush2.msra.mxu0 0.0
    %842 = vmatprep.subr.mxu0 0.0
    %843 = vmatpush2.msra.mxu0 0.0
    %844 = vmatprep.subr.mxu0 0.0
    %845 = vmatpush2.msra.mxu0 0.0
    %846 = vmatprep.subr.mxu0 0.0
    %847 = vmatpush2.msra.mxu0 0.0
    %848 = vmatprep.subr.mxu0 0.0
    %849 = vmatpush2.msra.mxu0 0.0
    %850 = vmatprep.subr.mxu0 0.0
    %851 = vmatpush2.msra.mxu0 0.0
    %852 = vmatprep.mubr.f32.mxu0 0.0
    %853 = vmatmul.mubr.f32.gmra.mxu0 %v783
    %v854 = vpop.f32.mrf.mxu0
    %v855 = vadd.f32 %v781, %v854
    %v856 = vpop.f32.mrf.mxu0
    %857 = vmatprep.mubr.f32.mxu0 0.0
    %858 = vmatmul.mubr.f32.gmra.mxu0 %v786
    %v859 = vpop.f32.mrf.mxu0
    %v860 = vadd.f32 %v781, %v859
    %v861 = vpop.f32.mrf.mxu0
    %862 = vdwg.mxu0
    %v863 = vlaneseq
    %v864 = vshrl.u32 %v863, 7
    %v865 = vsub.s32 5, %v864
    %v866 = vrot.slane %v18, %v865
    %v868 = vsel %vm499, %v855, 0
    %v871 = vsel %vm499, %v860, 0
    %873 = vmatprep.subr.mxu0 0.0
    %874 = vmatpush1.msra.mxu0 0.0
    %875 = vmatprep.subr.mxu0 0.0
    %876 = vmatpush1.msra.mxu0 0.0
    %877 = vmatprep.subr.mxu0 0.0
    %878 = vmatpush1.msra.mxu0 0.0
    %879 = vmatprep.subr.mxu0 0.0
    %880 = vmatpush1.msra.mxu0 0.0
    %881 = vmatprep.subr.mxu0 0.0
    %882 = vmatpush1.msra.mxu0 0.0
    %883 = vmatprep.subr.mxu0 0.0
    %884 = vmatpush1.msra.mxu0 0.0
    %885 = vmatprep.subr.mxu0 0.0
    %886 = vmatpush1.msra.mxu0 0.0
    %887 = vmatprep.subr.mxu0 0.0
    %888 = vmatpush1.msra.mxu0 0.0
    %889 = vmatprep.subr.mxu0 0.0
    %890 = vmatpush1.msra.mxu0 %v52
    %891 = vmatprep.subr.mxu0 0.0
    %892 = vmatpush1.msra.mxu0 %v51
    %893 = vmatprep.subr.mxu0 0.0
    %894 = vmatpush1.msra.mxu0 %v50
    %895 = vmatprep.subr.mxu0 0.0
    %896 = vmatpush1.msra.mxu0 %v49
    %897 = vmatprep.subr.mxu0 0.0
    %898 = vmatpush1.msra.mxu0 %v48
    %899 = vmatprep.subr.mxu0 0.0
    %900 = vmatpush1.msra.mxu0 %v47
    %901 = vmatprep.subr.mxu0 0.0
    %902 = vmatpush1.msra.mxu0 %v46
    %903 = vmatprep.subr.mxu0 0.0
    %904 = vmatpush1.msra.mxu0 %v45
    %905 = vmatprep.subr.mxu0 0.0
    %906 = vmatpush2.msra.mxu0 0.0
    %907 = vmatprep.subr.mxu0 0.0
    %908 = vmatpush2.msra.mxu0 0.0
    %909 = vmatprep.subr.mxu0 0.0
    %910 = vmatpush2.msra.mxu0 0.0
    %911 = vmatprep.subr.mxu0 0.0
    %912 = vmatpush2.msra.mxu0 0.0
    %913 = vmatprep.subr.mxu0 0.0
    %914 = vmatpush2.msra.mxu0 0.0
    %915 = vmatprep.subr.mxu0 0.0
    %916 = vmatpush2.msra.mxu0 0.0
    %917 = vmatprep.subr.mxu0 0.0
    %918 = vmatpush2.msra.mxu0 0.0
    %919 = vmatprep.subr.mxu0 0.0
    %920 = vmatpush2.msra.mxu0 0.0
    %921 = vmatprep.subr.mxu0 0.0
    %922 = vmatpush2.msra.mxu0 0.0
    %923 = vmatprep.subr.mxu0 0.0
    %924 = vmatpush2.msra.mxu0 0.0
    %925 = vmatprep.subr.mxu0 0.0
    %926 = vmatpush2.msra.mxu0 0.0
    %927 = vmatprep.subr.mxu0 0.0
    %928 = vmatpush2.msra.mxu0 0.0
    %929 = vmatprep.subr.mxu0 0.0
    %930 = vmatpush2.msra.mxu0 0.0
    %931 = vmatprep.subr.mxu0 0.0
    %932 = vmatpush2.msra.mxu0 0.0
    %933 = vmatprep.subr.mxu0 0.0
    %934 = vmatpush2.msra.mxu0 0.0
    %935 = vmatprep.subr.mxu0 0.0
    %936 = vmatpush2.msra.mxu0 0.0
    %937 = vmatprep.mubr.f32.mxu0 0.0
    %938 = vmatmul.mubr.f32.gmra.mxu0 %v868
    %v939 = vpop.f32.mrf.mxu0
    %v940 = vadd.f32 %v866, %v939
    %v941 = vpop.f32.mrf.mxu0
    %942 = vmatprep.mubr.f32.mxu0 0.0
    %943 = vmatmul.mubr.f32.gmra.mxu0 %v871
    %v944 = vpop.f32.mrf.mxu0
    %v945 = vadd.f32 %v866, %v944
    %v946 = vpop.f32.mrf.mxu0
    %947 = vdwg.mxu0
    %v948 = vmax.f32 %v940, 0.0
    %v949 = vmax.f32 %v945, 0.0
    %v950 = vadd.f32 %v948, %v742
    %v951 = vadd.f32 %v949, %v743
    %v952 = vsel %vm59, %v950, 0.0
    %953 = vadd.xlane.f32.xlu0 %v952
    %v954 = vpop.xlane.xlu0 %953
    %v955 = vsel %vm59, %v951, 0.0
    %956 = vadd.xlane.f32.xlu0 %v955
    %v957 = vpop.xlane.xlu0 %956
    %v958 = vmul.f32 %v954, %v66
    %v959 = vmul.f32 %v957, %v66
    %v960 = vmul.f32 %v950, %v950
    %v961 = vmul.f32 %v951, %v951
    %v962 = vsel %vm59, %v960, 0.0
    %963 = vadd.xlane.f32.xlu0 %v962
    %v964 = vpop.xlane.xlu0 %963
    %v965 = vsel %vm59, %v961, 0.0
    %966 = vadd.xlane.f32.xlu0 %v965
    %v967 = vpop.xlane.xlu0 %966
    %v968 = vmul.f32 %v964, %v66
    %v969 = vmul.f32 %v967, %v66
    %v970 = vmul.f32 %v958, %v958
    %v971 = vmul.f32 %v959, %v959
    %v972 = vsub.f32 %v968, %v970
    %v973 = vsub.f32 %v969, %v971
    %v974 = vsub.f32 %v950, %v958
    %v975 = vsub.f32 %v951, %v959
    %v976 = vadd.f32 %v972, 1e-05
    %v977 = vadd.f32 %v973, 1e-05
    %v978 = vrsqrt.pop %v976
    %v979 = vrsqrt.pop %v977
    %v980 = vmul.f32 %v974, %v978
    %v981 = vmul.f32 %v975, %v979
    %v982 = vmul.f32 %v980, %v32
    %v983 = vmul.f32 %v981, %v32
    %v984 = vadd.f32 %v982, %v36
    %v985 = vadd.f32 %v983, %v36
    %986 = vst.msk [vmem:[#allocation2] sm:$0xff] %vm59, %v984
    %987 = vst.msk [vmem:[#allocation2 + $0x8] sm:$0xff] %vm59, %v985
    // Predicated region
    $region18: #{cross_attention_block.1} parent=1 // pred_check
      _
    $region19: #{cross_attention_block.1} parent=1 // pred_check_branch
      %989 = sbr.rel (0) target = $region21
    $region20: #{cross_attention_block.1} parent=1 // pred_region
      %s991 = ssub.s32 256, 256
      %992 = vsyncadd [#allocation3], %s991
      %s993 = sshll.u32 [#allocation2], 4
      %s994 = int_to_ptr.vmem [resolvable:$true] %s993
      %999 = dma.vmem_to_hbm [thread:$0]  %s994, 256, %s4, [#allocation3], 128, 128, 8
    $region21: #{cross_attention_block.1} parent=1 // pred_fallthru
      _
    // Predicated region
    $region22: #{cross_attention_block.1} parent=1 // pred_check
      _
    $region23: #{cross_attention_block.1} parent=1 // pred_check_branch
      %1001 = sbr.rel (0) target = $region25
    $region24: #{cross_attention_block.1} parent=1 // pred_region
      %1002 = dma.done [#allocation3], 256
    $region25: #{cross_attention_block.1} parent=1 // pred_fallthru
      _
    %1003 = vsyncpa [#allocation3], 1

</llo_original>
